<compile_context>
chip_gen: v6e
topology: v6e:2x2x1
jax: 0.10.0
libtpu: 0.0.40
codegen_flags: <defaults>
</compile_context>

<pallas_src>
import functools

import jax
import jax.numpy as jnp
from jax.experimental import pallas as pl
from jax.experimental.pallas import tpu as pltpu

BN_EPS = 1e-5
HIDDEN = 128


def _round_up(x, m):
    return ((x + m - 1) // m) * m


def _bn_relu(h, gamma, beta):
    """Training-mode BatchNorm1d + ReLU, all math in f32.

    Two-pass biased variance (no E[h^2]-E[h]^2 cancellation); batch mean is
    folded into the additive term so the per-element path is one multiply-add
    before the ReLU. rsqrt lowers to the (otherwise idle) EUP slot.
    """
    mean = jnp.mean(h, axis=0, keepdims=True)
    var = jnp.mean(jnp.square(h - mean), axis=0, keepdims=True)
    scale = gamma * jax.lax.rsqrt(var + BN_EPS)
    shift = beta - mean * scale
    return jnp.maximum(h * scale + shift, 0.0)


def generator_kernel(x_ref, wslab_ref, w4b_ref, vecs_ref, o_ref, *, n_in, n_in_r):
    vecs = vecs_ref[...]                      # (8,128) f32: g1,be1,g2,be2,g3,be3,0,0

    # Pre-BN biases omitted: exactly cancelled by training-mode BN mean subtraction.
    x = x_ref[...].astype(jnp.bfloat16)
    h = jnp.dot(x, wslab_ref[0:n_in, :], preferred_element_type=jnp.float32)
    h = _bn_relu(h, vecs[0:1, :], vecs[1:2, :])

    h = jnp.dot(h.astype(jnp.bfloat16), wslab_ref[n_in_r:n_in_r + HIDDEN, :],
                preferred_element_type=jnp.float32)
    h = _bn_relu(h, vecs[2:3, :], vecs[3:4, :])

    h = jnp.dot(h.astype(jnp.bfloat16), wslab_ref[n_in_r + HIDDEN:n_in_r + 2 * HIDDEN, :],
                preferred_element_type=jnp.float32)
    h = _bn_relu(h, vecs[4:5, :], vecs[5:6, :])

    out = jnp.dot(h.astype(jnp.bfloat16), w4b_ref[0:HIDDEN, :],
                  preferred_element_type=jnp.float32)
    out = out + w4b_ref[HIDDEN:HIDDEN + 1, :].astype(jnp.float32)   # b_out row
    o_ref[...] = out.astype(o_ref.dtype)


def prepare_params(params):
    """One-time packing of parameters for the kernel (hoisted out of the forward)."""
    (w1, _b1, g1, be1), (w2, _b2, g2, be2), (w3, _b3, g3, be3) = params["bn_layers"]
    n_in = params["w_out"].shape[1]
    n_in_r = _round_up(n_in, 16)              # bf16 sublane-tile aligned start for w2/w3

    wslab = jnp.concatenate(
        [jnp.pad(w1, ((0, n_in_r - n_in), (0, 0))), w2, w3],
        axis=0).astype(jnp.bfloat16)                                   # (n_in_r+256, 128)

    w4b = jnp.concatenate(
        [params["w_out"], params["b_out"],
         jnp.zeros((15, n_in), jnp.float32)],
        axis=0).astype(jnp.bfloat16)                                   # (144, n_in)

    vecs = jnp.concatenate(
        [g1, be1, g2, be2, g3, be3, jnp.zeros((2, HIDDEN), jnp.float32)],
        axis=0)                                                        # (8, 128) f32

    return {"wslab": wslab, "w4b": w4b, "vecs": vecs}


@jax.jit
def generator_forward(x, prepped):
    wslab, w4b, vecs = prepped["wslab"], prepped["w4b"], prepped["vecs"]
    B, n_in = x.shape
    if B < 2:
        # PyTorch training-mode BatchNorm1d raises for B=1; fail loudly too.
        raise ValueError("training-mode BatchNorm requires batch size >= 2")
    n_in_r = wslab.shape[0] - 2 * HIDDEN
    assert w4b.shape[1] == n_in and n_in_r == _round_up(n_in, 16)

    flops = 2 * B * (2 * n_in * HIDDEN + 2 * HIDDEN * HIDDEN)
    bytes_accessed = (4 * x.size + 2 * wslab.size + 2 * w4b.size
                      + 4 * vecs.size + 4 * B * n_in)
    cost = pl.CostEstimate(flops=flops, transcendentals=3 * HIDDEN,
                           bytes_accessed=bytes_accessed)

    # VMEM footprint + headroom for f32 intermediates / compiler scratch.
    vmem_limit = int(min(bytes_accessed + 8 * 4 * B * HIDDEN + (4 << 20), 64 << 20))

    vmem_spec = pl.BlockSpec(memory_space=pltpu.MemorySpace.VMEM)
    kernel = functools.partial(generator_kernel, n_in=n_in, n_in_r=n_in_r)
    return pl.pallas_call(
        kernel,
        out_shape=jax.ShapeDtypeStruct((B, n_in), jnp.float32),
        in_specs=[vmem_spec] * 4,
        out_specs=vmem_spec,
        cost_estimate=cost,
        compiler_params=pltpu.CompilerParams(vmem_limit_bytes=vmem_limit),
    )(x, wslab, w4b, vecs)


def init_params(key, n_input, hidden=HIDDEN):
    """PyTorch-compatible init. Linear weights stored transposed as (in, out).

    W, b ~ U(-1/sqrt(fan_in), 1/sqrt(fan_in)); BatchNorm gamma=1, beta=0.
    Pre-BN biases are kept here (the f32 reference uses them); the kernel omits
    them because training-mode BN cancels them exactly.
    """
    assert 64 < n_input <= 1000, "this kernel implements the 128-wide branch"
    dims = [(n_input, hidden), (hidden, hidden), (hidden, hidden)]
    keys = jax.random.split(key, 2 * (len(dims) + 1))
    bn_layers = []
    for i, (fan_in, fan_out) in enumerate(dims):
        bound = 1.0 / jnp.sqrt(jnp.float32(fan_in))
        w = jax.random.uniform(keys[2 * i], (fan_in, fan_out), jnp.float32, -bound, bound)
        b = jax.random.uniform(keys[2 * i + 1], (1, fan_out), jnp.float32, -bound, bound)
        bn_layers.append((w, b, jnp.ones((1, fan_out), jnp.float32),
                          jnp.zeros((1, fan_out), jnp.float32)))
    bound = 1.0 / jnp.sqrt(jnp.float32(hidden))
    w_out = jax.random.uniform(keys[-2], (hidden, n_input), jnp.float32, -bound, bound)
    b_out = jax.random.uniform(keys[-1], (1, n_input), jnp.float32, -bound, bound)
    return {"bn_layers": bn_layers, "w_out": w_out, "b_out": b_out}


def generator_reference(x, params):
    """Pure-JAX f32 reference matching PyTorch semantics (pre-BN biases included)."""
    h = x
    for (w, b, g, be) in params["bn_layers"]:
        h = h @ w + b
        mean = jnp.mean(h, axis=0, keepdims=True)
        var = jnp.mean((h - mean) ** 2, axis=0, keepdims=True)
        h = (h - mean) / jnp.sqrt(var + BN_EPS) * g + be
        h = jnp.maximum(h, 0.0)
    return h @ params["w_out"] + params["b_out"]


def generator_reference_bf16(x, prepped):
    """Pure-JAX mirror of the kernel's exact arithmetic (bf16 MXU inputs, f32 BN)."""
    wslab, w4b, vecs = prepped["wslab"], prepped["w4b"], prepped["vecs"]
    n_in = w4b.shape[1]
    n_in_r = wslab.shape[0] - 2 * HIDDEN

    def bn_relu(h, g, be):
        mean = jnp.mean(h, axis=0, keepdims=True)
        var = jnp.mean(jnp.square(h - mean), axis=0, keepdims=True)
        scale = g * jax.lax.rsqrt(var + BN_EPS)
        return jnp.maximum(h * scale + (be - mean * scale), 0.0)

    h = jnp.dot(x.astype(jnp.bfloat16), wslab[0:n_in], preferred_element_type=jnp.float32)
    h = bn_relu(h, vecs[0:1], vecs[1:2])
    h = jnp.dot(h.astype(jnp.bfloat16), wslab[n_in_r:n_in_r + HIDDEN],
                preferred_element_type=jnp.float32)
    h = bn_relu(h, vecs[2:3], vecs[3:4])
    h = jnp.dot(h.astype(jnp.bfloat16), wslab[n_in_r + HIDDEN:n_in_r + 2 * HIDDEN],
                preferred_element_type=jnp.float32)
    h = bn_relu(h, vecs[4:5], vecs[5:6])
    out = jnp.dot(h.astype(jnp.bfloat16), w4b[0:HIDDEN], preferred_element_type=jnp.float32)
    return out + w4b[HIDDEN:HIDDEN + 1].astype(jnp.float32)


if __name__ == "__main__":
    key = jax.random.PRNGKey(0)
    k_x, k_p = jax.random.split(key)

    B = 8          # sublane-aligned batch
    N_INPUT = 96   # 64 < n_input <= 1000 -> 128-wide hidden branch

    x = jax.random.normal(k_x, (B, N_INPUT), jnp.float32)
    params = init_params(k_p, N_INPUT)
    prepped = prepare_params(params)        # one-time packing (outside the hot path)

    out = jax.block_until_ready(generator_forward(x, prepped))
    assert out.shape == (B, N_INPUT)

    # Correctness: kernel matches a pure-JAX mirror of its exact bf16/f32 arithmetic.
    ref_mirror = generator_reference_bf16(x, prepped)
    assert jnp.allclose(out, ref_mirror, atol=5e-3, rtol=5e-3), (
        float(jnp.max(jnp.abs(out - ref_mirror))))

    # Fidelity: close to the full-f32 PyTorch-semantics reference. Tolerance
    # reflects bf16 MXU inputs through 4 matmuls (per perf review, acceptable
    # for a GAN generator); observed error is O(1e-2).
    ref_f32 = generator_reference(x, params)
    assert jnp.allclose(out, ref_f32, atol=2e-1, rtol=1e-1), (
        float(jnp.max(jnp.abs(out - ref_f32))))

    print("KERNEL_OK")
</pallas_src>

<mosaic_0001>
module attributes {stable_mosaic.version = 11 : i64} {
  func.func @generator_kernel(%arg0: memref<8x96xf32, #tpu.memory_space<vmem>>, %arg1: memref<352x128xbf16, #tpu.memory_space<vmem>>, %arg2: memref<144x96xbf16, #tpu.memory_space<vmem>>, %arg3: memref<8x128xf32, #tpu.memory_space<vmem>>, %arg4: memref<8x96xf32, #tpu.memory_space<vmem>>) attributes {dimension_semantics = [], scalar_prefetch = 0 : i64, scratch_operands = 0 : i64, tpu.core_type = #tpu.core_type<tc>} {
    %c0 = arith.constant 0 : index
    %c0_0 = arith.constant 0 : index
    %0 = vector.load %arg3[%c0, %c0_0] : memref<8x128xf32, #tpu.memory_space<vmem>>, vector<8x128xf32>
    %c0_1 = arith.constant 0 : index
    %c0_2 = arith.constant 0 : index
    %1 = vector.load %arg0[%c0_1, %c0_2] : memref<8x96xf32, #tpu.memory_space<vmem>>, vector<8x96xf32>
    %2 = arith.truncf %1 : vector<8x96xf32> to vector<8x96xbf16>
    %c0_3 = arith.constant 0 : index
    %c0_4 = arith.constant 0 : index
    %3 = vector.load %arg1[%c0_3, %c0_4] : memref<352x128xbf16, #tpu.memory_space<vmem>>, vector<96x128xbf16>
    %cst = arith.constant dense<0.000000e+00> : vector<8x128xf32>
    %4 = tpu.matmul %2, %3, %cst {dimension_numbers = #tpu.dot_dimension_numbers<[1], [0], [0], [1], [0, 0, 1, 1], [], []>} : vector<8x96xbf16>, vector<96x128xbf16>, vector<8x128xf32> -> vector<8x128xf32>
    %5 = vector.extract_strided_slice %0 {offsets = [0, 0], sizes = [1, 128], strides = [1, 1]} : vector<8x128xf32> to vector<1x128xf32>
    %6 = vector.extract_strided_slice %0 {offsets = [1, 0], sizes = [1, 128], strides = [1, 1]} : vector<8x128xf32> to vector<1x128xf32>
    %cst_5 = arith.constant dense<0.000000e+00> : vector<128xf32>
    %7 = vector.multi_reduction <add>, %4, %cst_5 [0] : vector<8x128xf32> to vector<128xf32>
    %8 = vector.shape_cast %7 : vector<128xf32> to vector<1x128xf32>
    %cst_6 = arith.constant 8.000000e+00 : f32
    %9 = vector.broadcast %cst_6 : f32 to vector<1x128xf32>
    %10 = arith.divf %8, %9 : vector<1x128xf32>
    %11 = vector.broadcast %10 : vector<1x128xf32> to vector<8x128xf32>
    %12 = arith.subf %4, %11 : vector<8x128xf32>
    %13 = arith.mulf %12, %12 : vector<8x128xf32>
    %cst_7 = arith.constant dense<0.000000e+00> : vector<128xf32>
    %14 = vector.multi_reduction <add>, %13, %cst_7 [0] : vector<8x128xf32> to vector<128xf32>
    %15 = vector.shape_cast %14 : vector<128xf32> to vector<1x128xf32>
    %cst_8 = arith.constant 8.000000e+00 : f32
    %16 = vector.broadcast %cst_8 : f32 to vector<1x128xf32>
    %17 = arith.divf %15, %16 : vector<1x128xf32>
    %cst_9 = arith.constant 9.99999974E-6 : f32
    %18 = vector.broadcast %cst_9 : f32 to vector<1x128xf32>
    %19 = arith.addf %17, %18 : vector<1x128xf32>
    %20 = math.rsqrt %19 : vector<1x128xf32>
    %21 = arith.mulf %5, %20 : vector<1x128xf32>
    %22 = arith.mulf %10, %21 : vector<1x128xf32>
    %23 = arith.subf %6, %22 : vector<1x128xf32>
    %24 = vector.broadcast %21 : vector<1x128xf32> to vector<8x128xf32>
    %25 = arith.mulf %4, %24 : vector<8x128xf32>
    %26 = vector.broadcast %23 : vector<1x128xf32> to vector<8x128xf32>
    %27 = arith.addf %25, %26 : vector<8x128xf32>
    %cst_10 = arith.constant 0.000000e+00 : f32
    %28 = vector.broadcast %cst_10 : f32 to vector<8x128xf32>
    %29 = arith.maximumf %27, %28 : vector<8x128xf32>
    %30 = arith.truncf %29 : vector<8x128xf32> to vector<8x128xbf16>
    %c96 = arith.constant 96 : index
    %c0_11 = arith.constant 0 : index
    %31 = vector.load %arg1[%c96, %c0_11] : memref<352x128xbf16, #tpu.memory_space<vmem>>, vector<128x128xbf16>
    %cst_12 = arith.constant dense<0.000000e+00> : vector<8x128xf32>
    %32 = tpu.matmul %30, %31, %cst_12 {dimension_numbers = #tpu.dot_dimension_numbers<[1], [0], [0], [1], [0, 0, 1, 1], [], []>} : vector<8x128xbf16>, vector<128x128xbf16>, vector<8x128xf32> -> vector<8x128xf32>
    %33 = vector.extract_strided_slice %0 {offsets = [2, 0], sizes = [1, 128], strides = [1, 1]} : vector<8x128xf32> to vector<1x128xf32>
    %34 = vector.extract_strided_slice %0 {offsets = [3, 0], sizes = [1, 128], strides = [1, 1]} : vector<8x128xf32> to vector<1x128xf32>
    %cst_13 = arith.constant dense<0.000000e+00> : vector<128xf32>
    %35 = vector.multi_reduction <add>, %32, %cst_13 [0] : vector<8x128xf32> to vector<128xf32>
    %36 = vector.shape_cast %35 : vector<128xf32> to vector<1x128xf32>
    %cst_14 = arith.constant 8.000000e+00 : f32
    %37 = vector.broadcast %cst_14 : f32 to vector<1x128xf32>
    %38 = arith.divf %36, %37 : vector<1x128xf32>
    %39 = vector.broadcast %38 : vector<1x128xf32> to vector<8x128xf32>
    %40 = arith.subf %32, %39 : vector<8x128xf32>
    %41 = arith.mulf %40, %40 : vector<8x128xf32>
    %cst_15 = arith.constant dense<0.000000e+00> : vector<128xf32>
    %42 = vector.multi_reduction <add>, %41, %cst_15 [0] : vector<8x128xf32> to vector<128xf32>
    %43 = vector.shape_cast %42 : vector<128xf32> to vector<1x128xf32>
    %cst_16 = arith.constant 8.000000e+00 : f32
    %44 = vector.broadcast %cst_16 : f32 to vector<1x128xf32>
    %45 = arith.divf %43, %44 : vector<1x128xf32>
    %cst_17 = arith.constant 9.99999974E-6 : f32
    %46 = vector.broadcast %cst_17 : f32 to vector<1x128xf32>
    %47 = arith.addf %45, %46 : vector<1x128xf32>
    %48 = math.rsqrt %47 : vector<1x128xf32>
    %49 = arith.mulf %33, %48 : vector<1x128xf32>
    %50 = arith.mulf %38, %49 : vector<1x128xf32>
    %51 = arith.subf %34, %50 : vector<1x128xf32>
    %52 = vector.broadcast %49 : vector<1x128xf32> to vector<8x128xf32>
    %53 = arith.mulf %32, %52 : vector<8x128xf32>
    %54 = vector.broadcast %51 : vector<1x128xf32> to vector<8x128xf32>
    %55 = arith.addf %53, %54 : vector<8x128xf32>
    %cst_18 = arith.constant 0.000000e+00 : f32
    %56 = vector.broadcast %cst_18 : f32 to vector<8x128xf32>
    %57 = arith.maximumf %55, %56 : vector<8x128xf32>
    %58 = arith.truncf %57 : vector<8x128xf32> to vector<8x128xbf16>
    %c224 = arith.constant 224 : index
    %c0_19 = arith.constant 0 : index
    %59 = vector.load %arg1[%c224, %c0_19] : memref<352x128xbf16, #tpu.memory_space<vmem>>, vector<128x128xbf16>
    %cst_20 = arith.constant dense<0.000000e+00> : vector<8x128xf32>
    %60 = tpu.matmul %58, %59, %cst_20 {dimension_numbers = #tpu.dot_dimension_numbers<[1], [0], [0], [1], [0, 0, 1, 1], [], []>} : vector<8x128xbf16>, vector<128x128xbf16>, vector<8x128xf32> -> vector<8x128xf32>
    %61 = vector.extract_strided_slice %0 {offsets = [4, 0], sizes = [1, 128], strides = [1, 1]} : vector<8x128xf32> to vector<1x128xf32>
    %62 = vector.extract_strided_slice %0 {offsets = [5, 0], sizes = [1, 128], strides = [1, 1]} : vector<8x128xf32> to vector<1x128xf32>
    %cst_21 = arith.constant dense<0.000000e+00> : vector<128xf32>
    %63 = vector.multi_reduction <add>, %60, %cst_21 [0] : vector<8x128xf32> to vector<128xf32>
    %64 = vector.shape_cast %63 : vector<128xf32> to vector<1x128xf32>
    %cst_22 = arith.constant 8.000000e+00 : f32
    %65 = vector.broadcast %cst_22 : f32 to vector<1x128xf32>
    %66 = arith.divf %64, %65 : vector<1x128xf32>
    %67 = vector.broadcast %66 : vector<1x128xf32> to vector<8x128xf32>
    %68 = arith.subf %60, %67 : vector<8x128xf32>
    %69 = arith.mulf %68, %68 : vector<8x128xf32>
    %cst_23 = arith.constant dense<0.000000e+00> : vector<128xf32>
    %70 = vector.multi_reduction <add>, %69, %cst_23 [0] : vector<8x128xf32> to vector<128xf32>
    %71 = vector.shape_cast %70 : vector<128xf32> to vector<1x128xf32>
    %cst_24 = arith.constant 8.000000e+00 : f32
    %72 = vector.broadcast %cst_24 : f32 to vector<1x128xf32>
    %73 = arith.divf %71, %72 : vector<1x128xf32>
    %cst_25 = arith.constant 9.99999974E-6 : f32
    %74 = vector.broadcast %cst_25 : f32 to vector<1x128xf32>
    %75 = arith.addf %73, %74 : vector<1x128xf32>
    %76 = math.rsqrt %75 : vector<1x128xf32>
    %77 = arith.mulf %61, %76 : vector<1x128xf32>
    %78 = arith.mulf %66, %77 : vector<1x128xf32>
    %79 = arith.subf %62, %78 : vector<1x128xf32>
    %80 = vector.broadcast %77 : vector<1x128xf32> to vector<8x128xf32>
    %81 = arith.mulf %60, %80 : vector<8x128xf32>
    %82 = vector.broadcast %79 : vector<1x128xf32> to vector<8x128xf32>
    %83 = arith.addf %81, %82 : vector<8x128xf32>
    %cst_26 = arith.constant 0.000000e+00 : f32
    %84 = vector.broadcast %cst_26 : f32 to vector<8x128xf32>
    %85 = arith.maximumf %83, %84 : vector<8x128xf32>
    %86 = arith.truncf %85 : vector<8x128xf32> to vector<8x128xbf16>
    %c0_27 = arith.constant 0 : index
    %c0_28 = arith.constant 0 : index
    %87 = vector.load %arg2[%c0_27, %c0_28] : memref<144x96xbf16, #tpu.memory_space<vmem>>, vector<128x96xbf16>
    %cst_29 = arith.constant dense<0.000000e+00> : vector<8x96xf32>
    %88 = tpu.matmul %86, %87, %cst_29 {dimension_numbers = #tpu.dot_dimension_numbers<[1], [0], [0], [1], [0, 0, 1, 1], [], []>} : vector<8x128xbf16>, vector<128x96xbf16>, vector<8x96xf32> -> vector<8x96xf32>
    %c128 = arith.constant 128 : index
    %c0_30 = arith.constant 0 : index
    %89 = vector.load %arg2[%c128, %c0_30] : memref<144x96xbf16, #tpu.memory_space<vmem>>, vector<1x96xbf16>
    %90 = arith.extf %89 : vector<1x96xbf16> to vector<1x96xf32>
    %91 = vector.broadcast %90 : vector<1x96xf32> to vector<8x96xf32>
    %92 = arith.addf %88, %91 : vector<8x96xf32>
    %c0_31 = arith.constant 0 : index
    %c0_32 = arith.constant 0 : index
    %93 = vector.load %arg4[%c0_31, %c0_32] : memref<8x96xf32, #tpu.memory_space<vmem>>, vector<8x96xf32>
    tpu.vector_store %arg4[%c0_31, %c0_32], %92 {strides = array<i32>} : memref<8x96xf32, #tpu.memory_space<vmem>>, vector<8x96xf32>,
    return
  }
}

</mosaic_0001>

<llo_original>
// kernel: generator_forward.1
$region0: #{generator_forward.1}
  #allocation0 [shape = 'u32[]', space=smem, size = 0x4, offset = 0x4, fixed_abs, tag = 'smem constant byte address 0x4 - core index']
  #allocation1 [shape = 'u32[144,128]{1,0:T(1,128)}', space=vmem, size = 0x12000, scoped, tag = 'internal scratch']
  %s0 = inlined_call_operand.hbm [shape: f32[8,96], index: 0, kind: input, shape index: {}]
  %s1 = inlined_call_operand.hbm [shape: bf16[352,128], index: 1, kind: input, shape index: {}]
  %s2 = inlined_call_operand.hbm [shape: bf16[144,96], index: 2, kind: input, shape index: {}]
  %s3 = inlined_call_operand.hbm [shape: f32[8,128], index: 3, kind: input, shape index: {}]
  %s4 = inlined_call_operand.hbm [shape: f32[8,96], index: 4, kind: output, shape index: {}]
  %s5 = sld [smem:[#allocation0]]
  $region42: #{generator_forward.1} parent=0
    _
  %s7 = ssub.s32 1, %s5
  %s8 = scalar_select 0, %s7, %s5
  $region1: #{generator_forward.1} parent=0
    #allocation2 [shape = 'u8[4096]{0}', space=vmem, size = 0x1000, scoped, tag = 'input window, operand 0, single buffered']
    #allocation3 [shape = 's32[1]{0}', space=sflag, size = 0x4, scoped, tag = 'scoped memory for generator_forward.1']
    #allocation4 [shape = 's32[1]{0}', space=sflag, size = 0x4, scoped, tag = 'scoped memory for generator_forward.1']
    #allocation5 [shape = 'u8[90112]{0}', space=vmem, size = 0x16000, scoped, tag = 'input window, operand 1, single buffered']
    #allocation6 [shape = 's32[1]{0}', space=sflag, size = 0x4, scoped, tag = 'scoped memory for generator_forward.1']
    #allocation7 [shape = 'u8[36864]{0}', space=vmem, size = 0x9000, scoped, tag = 'input window, operand 2, single buffered']
    #allocation8 [shape = 'u8[4096]{0}', space=vmem, size = 0x1000, scoped, tag = 'input window, operand 3, single buffered']
    #allocation9 [shape = 's32[1]{0}', space=sflag, size = 0x4, scoped, tag = 'scoped memory for generator_forward.1']
    #allocation10 [shape = 'u8[4096]{0}', space=vmem, size = 0x1000, scoped, tag = 'output window, operand 0, single buffered']
    %9 = vsyncpa [#allocation3], 0
    %10 = vsyncpa [#allocation6], 0
    %11 = vsyncpa [#allocation9], 0
    %12 = vsyncpa [#allocation4], 0
    // Predicated region
    $region2: #{generator_forward.1} parent=1 // pred_check
      _
    $region3: #{generator_forward.1} parent=1 // pred_check_branch
      %14 = sbr.rel (0) target = $region5
    $region4: #{generator_forward.1} parent=1 // pred_region
      %s16 = ssub.s32 128, 128
      %17 = vsyncadd [#allocation3], %s16
      %s19 = sshll.u32 [#allocation2], 4
      %s20 = int_to_ptr.vmem [resolvable:$true] %s19
      %22 = dma.hbm_to_vmem [thread:$0]  %s0, 128, %s20, [#allocation3]
    $region5: #{generator_forward.1} parent=1 // pred_fallthru
      _
    // Predicated region
    $region6: #{generator_forward.1} parent=1 // pred_check
      _
    $region7: #{generator_forward.1} parent=1 // pred_check_branch
      %24 = sbr.rel (0) target = $region9
    $region8: #{generator_forward.1} parent=1 // pred_region
      %s26 = ssub.s32 2816, 2816
      %27 = vsyncadd [#allocation6], %s26
      %s28 = sshll.u32 [#allocation5], 4
      %s29 = int_to_ptr.vmem [resolvable:$true] %s28
      %34 = dma.hbm_to_vmem [thread:$0]  %s1, 2816, %s29, [#allocation6], 64, 64, 4
    $region9: #{generator_forward.1} parent=1 // pred_fallthru
      _
    // Predicated region
    $region10: #{generator_forward.1} parent=1 // pred_check
      _
    $region11: #{generator_forward.1} parent=1 // pred_check_branch
      %36 = sbr.rel (0) target = $region13
    $region12: #{generator_forward.1} parent=1 // pred_region
      %s38 = ssub.s32 1152, 1152
      %39 = vsyncadd [#allocation6], %s38
      %s40 = sshll.u32 [#allocation7], 4
      %s41 = int_to_ptr.vmem [resolvable:$true] %s40
      %46 = dma.hbm_to_vmem [thread:$0]  %s2, 1152, %s41, [#allocation6], 64, 64, 4
    $region13: #{generator_forward.1} parent=1 // pred_fallthru
      _
    // Predicated region
    $region14: #{generator_forward.1} parent=1 // pred_check
      _
    $region15: #{generator_forward.1} parent=1 // pred_check_branch
      %48 = sbr.rel (0) target = $region17
    $region16: #{generator_forward.1} parent=1 // pred_region
      %s50 = ssub.s32 128, 128
      %51 = vsyncadd [#allocation9], %s50
      %s53 = sshll.u32 [#allocation8], 4
      %s54 = int_to_ptr.vmem [resolvable:$true] %s53
      %56 = dma.hbm_to_vmem [thread:$0]  %s3, 128, %s54, [#allocation9]
    $region17: #{generator_forward.1} parent=1 // pred_fallthru
      _
    // Predicated region
    $region18: #{generator_forward.1} parent=1 // pred_check
      _
    $region19: #{generator_forward.1} parent=1 // pred_check_branch
      %58 = sbr.rel (0) target = $region21
    $region20: #{generator_forward.1} parent=1 // pred_region
      %59 = dma.done [#allocation3], 128
    $region21: #{generator_forward.1} parent=1 // pred_fallthru
      _
    // Predicated region
    $region22: #{generator_forward.1} parent=1 // pred_check
      _
    $region23: #{generator_forward.1} parent=1 // pred_check_branch
      %61 = sbr.rel (0) target = $region25
    $region24: #{generator_forward.1} parent=1 // pred_region
      %62 = dma.done [#allocation6], 2816
    $region25: #{generator_forward.1} parent=1 // pred_fallthru
      _
    // Predicated region
    $region26: #{generator_forward.1} parent=1 // pred_check
      _
    $region27: #{generator_forward.1} parent=1 // pred_check_branch
      %64 = sbr.rel (0) target = $region29
    $region28: #{generator_forward.1} parent=1 // pred_region
      %65 = dma.done [#allocation6], 1152
    $region29: #{generator_forward.1} parent=1 // pred_fallthru
      _
    // Predicated region
    $region30: #{generator_forward.1} parent=1 // pred_check
      _
    $region31: #{generator_forward.1} parent=1 // pred_check_branch
      %67 = sbr.rel (0) target = $region33
    $region32: #{generator_forward.1} parent=1 // pred_region
      %68 = dma.done [#allocation9], 128
    $region33: #{generator_forward.1} parent=1 // pred_fallthru
      _
    %v70 = vld [vmem:[#allocation8] sm:$0xff]
    %v71 = vld [vmem:[#allocation2] sm:$0xff]
    %v72 = vpack.c.bf16 %v71, %v71
    %v73 = vld [vmem:[#allocation5] sm:$0xf]
    %v74 = vld [vmem:[#allocation5 + $0x4] sm:$0xf]
    %v75 = vld [vmem:[#allocation5 + $0x8] sm:$0xf]
    %v76 = vld [vmem:[#allocation5 + $0xc] sm:$0xf]
    %v77 = vld [vmem:[#allocation5 + $0x10] sm:$0xf]
    %v78 = vld [vmem:[#allocation5 + $0x14] sm:$0xf]
    %v79 = vld [vmem:[#allocation5 + $0x18] sm:$0xf]
    %v80 = vld [vmem:[#allocation5 + $0x1c] sm:$0xf]
    %v81 = vld [vmem:[#allocation5 + $0x20] sm:$0xf]
    %v82 = vld [vmem:[#allocation5 + $0x24] sm:$0xf]
    %v83 = vld [vmem:[#allocation5 + $0x28] sm:$0xf]
    %v84 = vld [vmem:[#allocation5 + $0x2c] sm:$0xf]
    %v97 = vunpack.c.l.b16 %v73
    %v98 = vunpack.c.l.b16 %v74
    %v99 = vunpack.c.l.b16 %v75
    %v100 = vunpack.c.l.b16 %v76
    %v101 = vunpack.c.l.b16 %v77
    %v102 = vunpack.c.l.b16 %v78
    %v103 = vunpack.c.l.b16 %v79
    %v104 = vunpack.c.l.b16 %v80
    %v105 = vunpack.c.l.b16 %v81
    %v106 = vunpack.c.l.b16 %v82
    %v107 = vunpack.c.l.b16 %v83
    %v108 = vunpack.c.l.b16 %v84
    %v109 = vpack.c.b16 %v98, %v97
    %v110 = vpack.c.b16 %v100, %v99
    %v111 = vpack.c.b16 %v102, %v101
    %v112 = vpack.c.b16 %v104, %v103
    %v113 = vpack.c.b16 %v106, %v105
    %v114 = vpack.c.b16 %v108, %v107
    %vm121 = vcmask 785408
    %v123 = vsel %vm121, %v72, 0
    %125 = vmatprep.subr.bf16.mxu0 0
    %126 = vmatpush1.bf16.msra.mxu0 0
    %127 = vmatprep.subr.bf16.mxu0 0
    %128 = vmatpush1.bf16.msra.mxu0 0
    %129 = vmatprep.subr.bf16.mxu0 0
    %130 = vmatpush1.bf16.msra.mxu0 %v114
    %131 = vmatprep.subr.bf16.mxu0 0
    %132 = vmatpush1.bf16.msra.mxu0 %v113
    %133 = vmatprep.subr.bf16.mxu0 0
    %134 = vmatpush1.bf16.msra.mxu0 %v112
    %135 = vmatprep.subr.bf16.mxu0 0
    %136 = vmatpush1.bf16.msra.mxu0 %v111
    %137 = vmatprep.subr.bf16.mxu0 0
    %138 = vmatpush1.bf16.msra.mxu0 %v110
    %139 = vmatprep.subr.bf16.mxu0 0
    %140 = vmatpush1.bf16.msra.mxu0 %v109
    %141 = vmatprep.subr.bf16.mxu0 0
    %142 = vmatpush2.bf16.msra.mxu0 0
    %143 = vmatprep.subr.bf16.mxu0 0
    %144 = vmatpush2.bf16.msra.mxu0 0
    %145 = vmatprep.subr.bf16.mxu0 0
    %146 = vmatpush2.bf16.msra.mxu0 0
    %147 = vmatprep.subr.bf16.mxu0 0
    %148 = vmatpush2.bf16.msra.mxu0 0
    %149 = vmatprep.subr.bf16.mxu0 0
    %150 = vmatpush2.bf16.msra.mxu0 0
    %151 = vmatprep.subr.bf16.mxu0 0
    %152 = vmatpush2.bf16.msra.mxu0 0
    %153 = vmatprep.subr.bf16.mxu0 0
    %154 = vmatpush2.bf16.msra.mxu0 0
    %155 = vmatprep.subr.bf16.mxu0 0
    %156 = vmatpush2.bf16.msra.mxu0 0
    %157 = vmatprep.mubr.bf16.mxu0 0
    %158 = vmatmul.mubr.bf16.gmra.mxu0 %v123
    %v159 = vpop.f32.mrf.mxu0
    %v160 = vadd.f32 0.0, %v159
    %v161 = vpop.f32.mrf.mxu0
    %v162 = vpop.f32.mrf.mxu0
    %v163 = vpop.f32.mrf.mxu0
    %164 = vdwg.mxu0
    %v165 = vrot.slane %v160, 4
    %v166 = vadd.f32 %v160, %v165
    %v167 = vrot.slane %v166, 2
    %v168 = vadd.f32 %v166, %v167
    %v169 = vrot.slane %v168, 1
    %v170 = vadd.f32 %v168, %v169
    %v171 = vrcp.pop 8.0
    %v172 = vmul.f32 %v170, %v171
    %v173 = vsub.f32 %v160, %v172
    %v174 = vmul.f32 %v173, %v173
    %v175 = vrot.slane %v174, 4
    %v176 = vadd.f32 %v174, %v175
    %v177 = vrot.slane %v176, 2
    %v178 = vadd.f32 %v176, %v177
    %v179 = vrot.slane %v178, 1
    %v180 = vadd.f32 %v178, %v179
    %v181 = vmul.f32 %v180, %v171
    %v182 = vadd.f32 %v181, 1e-05
    %v183 = vrsqrt.pop %v182
    %v184 = vmul.f32 %v70, %v183
    %v185 = vmul.f32 %v172, %v184
    %v187 = vrot.slane %v185, 7
    %v189 = vsub.f32 %v70, %v187
    %v190 = vlaneseq
    %v191 = vshrl.u32 %v190, 7
    %v192 = vsub.s32 0, %v191
    %v193 = vrot.slane %v184, %v192
    %v194 = vmul.f32 %v160, %v193
    %v195 = vlaneseq
    %v196 = vshrl.u32 %v195, 7
    %v197 = vsub.s32 1, %v196
    %v198 = vrot.slane %v189, %v197
    %v199 = vadd.f32 %v194, %v198
    %v200 = vmax.f32 %v199, 0.0
    %v201 = vpack.c.bf16 %v200, %v200
    %v202 = vld [vmem:[#allocation5 + $0x30] sm:$0xf]
    %v203 = vld [vmem:[#allocation5 + $0x34] sm:$0xf]
    %v204 = vld [vmem:[#allocation5 + $0x38] sm:$0xf]
    %v205 = vld [vmem:[#allocation5 + $0x3c] sm:$0xf]
    %v206 = vld [vmem:[#allocation5 + $0x40] sm:$0xf]
    %v207 = vld [vmem:[#allocation5 + $0x44] sm:$0xf]
    %v208 = vld [vmem:[#allocation5 + $0x48] sm:$0xf]
    %v209 = vld [vmem:[#allocation5 + $0x4c] sm:$0xf]
    %v210 = vld [vmem:[#allocation5 + $0x50] sm:$0xf]
    %v211 = vld [vmem:[#allocation5 + $0x54] sm:$0xf]
    %v212 = vld [vmem:[#allocation5 + $0x58] sm:$0xf]
    %v213 = vld [vmem:[#allocation5 + $0x5c] sm:$0xf]
    %v214 = vld [vmem:[#allocation5 + $0x60] sm:$0xf]
    %v215 = vld [vmem:[#allocation5 + $0x64] sm:$0xf]
    %v216 = vld [vmem:[#allocation5 + $0x68] sm:$0xf]
    %v217 = vld [vmem:[#allocation5 + $0x6c] sm:$0xf]
    %v234 = vunpack.c.l.b16 %v202
    %v235 = vunpack.c.l.b16 %v203
    %v236 = vunpack.c.l.b16 %v204
    %v237 = vunpack.c.l.b16 %v205
    %v238 = vunpack.c.l.b16 %v206
    %v239 = vunpack.c.l.b16 %v207
    %v240 = vunpack.c.l.b16 %v208
    %v241 = vunpack.c.l.b16 %v209
    %v242 = vunpack.c.l.b16 %v210
    %v243 = vunpack.c.l.b16 %v211
    %v244 = vunpack.c.l.b16 %v212
    %v245 = vunpack.c.l.b16 %v213
    %v246 = vunpack.c.l.b16 %v214
    %v247 = vunpack.c.l.b16 %v215
    %v248 = vunpack.c.l.b16 %v216
    %v249 = vunpack.c.l.b16 %v217
    %v250 = vpack.c.b16 %v235, %v234
    %v251 = vpack.c.b16 %v237, %v236
    %v252 = vpack.c.b16 %v239, %v238
    %v253 = vpack.c.b16 %v241, %v240
    %v254 = vpack.c.b16 %v243, %v242
    %v255 = vpack.c.b16 %v245, %v244
    %v256 = vpack.c.b16 %v247, %v246
    %v257 = vpack.c.b16 %v249, %v248
    %266 = vmatprep.subr.bf16.mxu0 0
    %267 = vmatpush1.bf16.msra.mxu0 %v257
    %268 = vmatprep.subr.bf16.mxu0 0
    %269 = vmatpush1.bf16.msra.mxu0 %v256
    %270 = vmatprep.subr.bf16.mxu0 0
    %271 = vmatpush1.bf16.msra.mxu0 %v255
    %272 = vmatprep.subr.bf16.mxu0 0
    %273 = vmatpush1.bf16.msra.mxu0 %v254
    %274 = vmatprep.subr.bf16.mxu0 0
    %275 = vmatpush1.bf16.msra.mxu0 %v253
    %276 = vmatprep.subr.bf16.mxu0 0
    %277 = vmatpush1.bf16.msra.mxu0 %v252
    %278 = vmatprep.subr.bf16.mxu0 0
    %279 = vmatpush1.bf16.msra.mxu0 %v251
    %280 = vmatprep.subr.bf16.mxu0 0
    %281 = vmatpush1.bf16.msra.mxu0 %v250
    %282 = vmatprep.subr.bf16.mxu0 0
    %283 = vmatpush2.bf16.msra.mxu0 0
    %284 = vmatprep.subr.bf16.mxu0 0
    %285 = vmatpush2.bf16.msra.mxu0 0
    %286 = vmatprep.subr.bf16.mxu0 0
    %287 = vmatpush2.bf16.msra.mxu0 0
    %288 = vmatprep.subr.bf16.mxu0 0
    %289 = vmatpush2.bf16.msra.mxu0 0
    %290 = vmatprep.subr.bf16.mxu0 0
    %291 = vmatpush2.bf16.msra.mxu0 0
    %292 = vmatprep.subr.bf16.mxu0 0
    %293 = vmatpush2.bf16.msra.mxu0 0
    %294 = vmatprep.subr.bf16.mxu0 0
    %295 = vmatpush2.bf16.msra.mxu0 0
    %296 = vmatprep.subr.bf16.mxu0 0
    %297 = vmatpush2.bf16.msra.mxu0 0
    %298 = vmatprep.mubr.bf16.mxu0 0
    %299 = vmatmul.mubr.bf16.gmra.mxu0 %v201
    %v300 = vpop.f32.mrf.mxu0
    %v301 = vadd.f32 0.0, %v300
    %v302 = vpop.f32.mrf.mxu0
    %v303 = vpop.f32.mrf.mxu0
    %v304 = vpop.f32.mrf.mxu0
    %305 = vdwg.mxu0
    %v306 = vrot.slane %v301, 4
    %v307 = vadd.f32 %v301, %v306
    %v308 = vrot.slane %v307, 2
    %v309 = vadd.f32 %v307, %v308
    %v310 = vrot.slane %v309, 1
    %v311 = vadd.f32 %v309, %v310
    %v312 = vmul.f32 %v311, %v171
    %v313 = vsub.f32 %v301, %v312
    %v314 = vmul.f32 %v313, %v313
    %v315 = vrot.slane %v314, 4
    %v316 = vadd.f32 %v314, %v315
    %v317 = vrot.slane %v316, 2
    %v318 = vadd.f32 %v316, %v317
    %v319 = vrot.slane %v318, 1
    %v320 = vadd.f32 %v318, %v319
    %v321 = vmul.f32 %v320, %v171
    %v322 = vadd.f32 %v321, 1e-05
    %v323 = vrsqrt.pop %v322
    %v324 = vmul.f32 %v70, %v323
    %v325 = vmul.f32 %v312, %v324
    %v327 = vrot.slane %v325, 7
    %v329 = vsub.f32 %v70, %v327
    %v330 = vlaneseq
    %v331 = vshrl.u32 %v330, 7
    %v332 = vsub.s32 2, %v331
    %v333 = vrot.slane %v324, %v332
    %v334 = vmul.f32 %v301, %v333
    %v335 = vlaneseq
    %v336 = vshrl.u32 %v335, 7
    %v337 = vsub.s32 3, %v336
    %v338 = vrot.slane %v329, %v337
    %v339 = vadd.f32 %v334, %v338
    %v340 = vmax.f32 %v339, 0.0
    %v341 = vpack.c.bf16 %v340, %v340
    %v342 = vld [vmem:[#allocation5 + $0x70] sm:$0xf]
    %v343 = vld [vmem:[#allocation5 + $0x74] sm:$0xf]
    %v344 = vld [vmem:[#allocation5 + $0x78] sm:$0xf]
    %v345 = vld [vmem:[#allocation5 + $0x7c] sm:$0xf]
    %v346 = vld [vmem:[#allocation5 + $0x80] sm:$0xf]
    %v347 = vld [vmem:[#allocation5 + $0x84] sm:$0xf]
    %v348 = vld [vmem:[#allocation5 + $0x88] sm:$0xf]
    %v349 = vld [vmem:[#allocation5 + $0x8c] sm:$0xf]
    %v350 = vld [vmem:[#allocation5 + $0x90] sm:$0xf]
    %v351 = vld [vmem:[#allocation5 + $0x94] sm:$0xf]
    %v352 = vld [vmem:[#allocation5 + $0x98] sm:$0xf]
    %v353 = vld [vmem:[#allocation5 + $0x9c] sm:$0xf]
    %v354 = vld [vmem:[#allocation5 + $0xa0] sm:$0xf]
    %v355 = vld [vmem:[#allocation5 + $0xa4] sm:$0xf]
    %v356 = vld [vmem:[#allocation5 + $0xa8] sm:$0xf]
    %v357 = vld [vmem:[#allocation5 + $0xac] sm:$0xf]
    %v374 = vunpack.c.l.b16 %v342
    %v375 = vunpack.c.l.b16 %v343
    %v376 = vunpack.c.l.b16 %v344
    %v377 = vunpack.c.l.b16 %v345
    %v378 = vunpack.c.l.b16 %v346
    %v379 = vunpack.c.l.b16 %v347
    %v380 = vunpack.c.l.b16 %v348
    %v381 = vunpack.c.l.b16 %v349
    %v382 = vunpack.c.l.b16 %v350
    %v383 = vunpack.c.l.b16 %v351
    %v384 = vunpack.c.l.b16 %v352
    %v385 = vunpack.c.l.b16 %v353
    %v386 = vunpack.c.l.b16 %v354
    %v387 = vunpack.c.l.b16 %v355
    %v388 = vunpack.c.l.b16 %v356
    %v389 = vunpack.c.l.b16 %v357
    %v390 = vpack.c.b16 %v375, %v374
    %v391 = vpack.c.b16 %v377, %v376
    %v392 = vpack.c.b16 %v379, %v378
    %v393 = vpack.c.b16 %v381, %v380
    %v394 = vpack.c.b16 %v383, %v382
    %v395 = vpack.c.b16 %v385, %v384
    %v396 = vpack.c.b16 %v387, %v386
    %v397 = vpack.c.b16 %v389, %v388
    %406 = vmatprep.subr.bf16.mxu0 0
    %407 = vmatpush1.bf16.msra.mxu0 %v397
    %408 = vmatprep.subr.bf16.mxu0 0
    %409 = vmatpush1.bf16.msra.mxu0 %v396
    %410 = vmatprep.subr.bf16.mxu0 0
    %411 = vmatpush1.bf16.msra.mxu0 %v395
    %412 = vmatprep.subr.bf16.mxu0 0
    %413 = vmatpush1.bf16.msra.mxu0 %v394
    %414 = vmatprep.subr.bf16.mxu0 0
    %415 = vmatpush1.bf16.msra.mxu0 %v393
    %416 = vmatprep.subr.bf16.mxu0 0
    %417 = vmatpush1.bf16.msra.mxu0 %v392
    %418 = vmatprep.subr.bf16.mxu0 0
    %419 = vmatpush1.bf16.msra.mxu0 %v391
    %420 = vmatprep.subr.bf16.mxu0 0
    %421 = vmatpush1.bf16.msra.mxu0 %v390
    %422 = vmatprep.subr.bf16.mxu0 0
    %423 = vmatpush2.bf16.msra.mxu0 0
    %424 = vmatprep.subr.bf16.mxu0 0
    %425 = vmatpush2.bf16.msra.mxu0 0
    %426 = vmatprep.subr.bf16.mxu0 0
    %427 = vmatpush2.bf16.msra.mxu0 0
    %428 = vmatprep.subr.bf16.mxu0 0
    %429 = vmatpush2.bf16.msra.mxu0 0
    %430 = vmatprep.subr.bf16.mxu0 0
    %431 = vmatpush2.bf16.msra.mxu0 0
    %432 = vmatprep.subr.bf16.mxu0 0
    %433 = vmatpush2.bf16.msra.mxu0 0
    %434 = vmatprep.subr.bf16.mxu0 0
    %435 = vmatpush2.bf16.msra.mxu0 0
    %436 = vmatprep.subr.bf16.mxu0 0
    %437 = vmatpush2.bf16.msra.mxu0 0
    %438 = vmatprep.mubr.bf16.mxu0 0
    %439 = vmatmul.mubr.bf16.gmra.mxu0 %v341
    %v440 = vpop.f32.mrf.mxu0
    %v441 = vadd.f32 0.0, %v440
    %v442 = vpop.f32.mrf.mxu0
    %v443 = vpop.f32.mrf.mxu0
    %v444 = vpop.f32.mrf.mxu0
    %445 = vdwg.mxu0
    %v446 = vrot.slane %v441, 4
    %v447 = vadd.f32 %v441, %v446
    %v448 = vrot.slane %v447, 2
    %v449 = vadd.f32 %v447, %v448
    %v450 = vrot.slane %v449, 1
    %v451 = vadd.f32 %v449, %v450
    %v452 = vmul.f32 %v451, %v171
    %v453 = vsub.f32 %v441, %v452
    %v454 = vmul.f32 %v453, %v453
    %v455 = vrot.slane %v454, 4
    %v456 = vadd.f32 %v454, %v455
    %v457 = vrot.slane %v456, 2
    %v458 = vadd.f32 %v456, %v457
    %v459 = vrot.slane %v458, 1
    %v460 = vadd.f32 %v458, %v459
    %v461 = vmul.f32 %v460, %v171
    %v462 = vadd.f32 %v461, 1e-05
    %v463 = vrsqrt.pop %v462
    %v464 = vmul.f32 %v70, %v463
    %v465 = vmul.f32 %v452, %v464
    %v467 = vrot.slane %v465, 7
    %v469 = vsub.f32 %v70, %v467
    %v470 = vlaneseq
    %v471 = vshrl.u32 %v470, 7
    %v472 = vsub.s32 4, %v471
    %v473 = vrot.slane %v464, %v472
    %v474 = vmul.f32 %v441, %v473
    %v475 = vlaneseq
    %v476 = vshrl.u32 %v475, 7
    %v477 = vsub.s32 5, %v476
    %v478 = vrot.slane %v469, %v477
    %v479 = vadd.f32 %v474, %v478
    %v480 = vmax.f32 %v479, 0.0
    %v481 = vpack.c.bf16 %v480, %v480
    %v482 = vld [vmem:[#allocation7] sm:$0xf]
    %v483 = vld [vmem:[#allocation7 + $0x4] sm:$0xf]
    %v484 = vld [vmem:[#allocation7 + $0x8] sm:$0xf]
    %v485 = vld [vmem:[#allocation7 + $0xc] sm:$0xf]
    %v486 = vld [vmem:[#allocation7 + $0x10] sm:$0xf]
    %v487 = vld [vmem:[#allocation7 + $0x14] sm:$0xf]
    %v488 = vld [vmem:[#allocation7 + $0x18] sm:$0xf]
    %v489 = vld [vmem:[#allocation7 + $0x1c] sm:$0xf]
    %v490 = vld [vmem:[#allocation7 + $0x20] sm:$0xf]
    %v491 = vld [vmem:[#allocation7 + $0x24] sm:$0xf]
    %v492 = vld [vmem:[#allocation7 + $0x28] sm:$0xf]
    %v493 = vld [vmem:[#allocation7 + $0x2c] sm:$0xf]
    %v494 = vld [vmem:[#allocation7 + $0x30] sm:$0xf]
    %v495 = vld [vmem:[#allocation7 + $0x34] sm:$0xf]
    %v496 = vld [vmem:[#allocation7 + $0x38] sm:$0xf]
    %v497 = vld [vmem:[#allocation7 + $0x3c] sm:$0xf]
    %v498 = vld [vmem:[#allocation7 + $0x40] sm:$0x1]
    %v499 = vunpack.c.l.bf16 %v498
    %v500 = vlaneseq
    %v501 = vshrl.u32 %v500, 7
    %v502 = vsub.s32 0, %v501
    %v503 = vrot.slane %v499, %v502
    %v520 = vunpack.c.l.b16 %v482
    %v521 = vunpack.c.l.b16 %v483
    %v522 = vunpack.c.l.b16 %v484
    %v523 = vunpack.c.l.b16 %v485
    %v524 = vunpack.c.l.b16 %v486
    %v525 = vunpack.c.l.b16 %v487
    %v526 = vunpack.c.l.b16 %v488
    %v527 = vunpack.c.l.b16 %v489
    %v528 = vunpack.c.l.b16 %v490
    %v529 = vunpack.c.l.b16 %v491
    %v530 = vunpack.c.l.b16 %v492
    %v531 = vunpack.c.l.b16 %v493
    %v532 = vunpack.c.l.b16 %v494
    %v533 = vunpack.c.l.b16 %v495
    %v534 = vunpack.c.l.b16 %v496
    %v535 = vunpack.c.l.b16 %v497
    %v536 = vpack.c.b16 %v521, %v520
    %v537 = vpack.c.b16 %v523, %v522
    %v538 = vpack.c.b16 %v525, %v524
    %v539 = vpack.c.b16 %v527, %v526
    %v540 = vpack.c.b16 %v529, %v528
    %v541 = vpack.c.b16 %v531, %v530
    %v542 = vpack.c.b16 %v533, %v532
    %v543 = vpack.c.b16 %v535, %v534
    %552 = vmatprep.subr.bf16.mxu0 0
    %553 = vmatpush1.bf16.msra.mxu0 %v543
    %554 = vmatprep.subr.bf16.mxu0 0
    %555 = vmatpush1.bf16.msra.mxu0 %v542
    %556 = vmatprep.subr.bf16.mxu0 0
    %557 = vmatpush1.bf16.msra.mxu0 %v541
    %558 = vmatprep.subr.bf16.mxu0 0
    %559 = vmatpush1.bf16.msra.mxu0 %v540
    %560 = vmatprep.subr.bf16.mxu0 0
    %561 = vmatpush1.bf16.msra.mxu0 %v539
    %562 = vmatprep.subr.bf16.mxu0 0
    %563 = vmatpush1.bf16.msra.mxu0 %v538
    %564 = vmatprep.subr.bf16.mxu0 0
    %565 = vmatpush1.bf16.msra.mxu0 %v537
    %566 = vmatprep.subr.bf16.mxu0 0
    %567 = vmatpush1.bf16.msra.mxu0 %v536
    %568 = vmatprep.subr.bf16.mxu0 0
    %569 = vmatpush2.bf16.msra.mxu0 0
    %570 = vmatprep.subr.bf16.mxu0 0
    %571 = vmatpush2.bf16.msra.mxu0 0
    %572 = vmatprep.subr.bf16.mxu0 0
    %573 = vmatpush2.bf16.msra.mxu0 0
    %574 = vmatprep.subr.bf16.mxu0 0
    %575 = vmatpush2.bf16.msra.mxu0 0
    %576 = vmatprep.subr.bf16.mxu0 0
    %577 = vmatpush2.bf16.msra.mxu0 0
    %578 = vmatprep.subr.bf16.mxu0 0
    %579 = vmatpush2.bf16.msra.mxu0 0
    %580 = vmatprep.subr.bf16.mxu0 0
    %581 = vmatpush2.bf16.msra.mxu0 0
    %582 = vmatprep.subr.bf16.mxu0 0
    %583 = vmatpush2.bf16.msra.mxu0 0
    %584 = vmatprep.mubr.bf16.mxu0 0
    %585 = vmatmul.mubr.bf16.gmra.mxu0 %v481
    %v586 = vpop.f32.mrf.mxu0
    %v587 = vadd.f32 %v503, %v586
    %v588 = vpop.f32.mrf.mxu0
    %v589 = vpop.f32.mrf.mxu0
    %v590 = vpop.f32.mrf.mxu0
    %591 = vdwg.mxu0
    %592 = vst.msk [vmem:[#allocation10] sm:$0xff] %vm121, %v587
    // Predicated region
    $region34: #{generator_forward.1} parent=1 // pred_check
      _
    $region35: #{generator_forward.1} parent=1 // pred_check_branch
      %594 = sbr.rel (0) target = $region37
    $region36: #{generator_forward.1} parent=1 // pred_region
      %s596 = ssub.s32 128, 128
      %597 = vsyncadd [#allocation4], %s596
      %s599 = sshll.u32 [#allocation10], 4
      %s600 = int_to_ptr.vmem [resolvable:$true] %s599
      %602 = dma.vmem_to_hbm [thread:$0]  %s600, 128, %s4, [#allocation4]
    $region37: #{generator_forward.1} parent=1 // pred_fallthru
      _
    // Predicated region
    $region38: #{generator_forward.1} parent=1 // pred_check
      _
    $region39: #{generator_forward.1} parent=1 // pred_check_branch
      %604 = sbr.rel (0) target = $region41
    $region40: #{generator_forward.1} parent=1 // pred_region
      %605 = dma.done [#allocation4], 128
    $region41: #{generator_forward.1} parent=1 // pred_fallthru
      _
    %606 = vsyncpa [#allocation3], 1
    %607 = vsyncpa [#allocation6], 1
    %608 = vsyncpa [#allocation9], 1
    %609 = vsyncpa [#allocation4], 1

</llo_original>
